<compile_context>
chip_gen: v5e
topology: v5e:2x2
jax: 0.10.0
libtpu: 0.0.40
codegen_flags: <defaults>
</compile_context>

<pallas_src>
import functools

import jax
import jax.numpy as jnp
from jax import lax
from jax.experimental import pallas as pl
from jax.experimental.pallas import tpu as pltpu

EPS = 1e-5
_LANE = 128


def _round_up(x, m):
    return ((x + m - 1) // m) * m


# =============================== fused in-VMEM path ===============================
def _fused_kernel(l_out, lp, inv_count, x_ref, pos_ref, w1_ref, w20_ref, w21_ref, w22_ref,
                  w3_ref, wr_ref, bn1_ref, bn2_ref, bn3_ref, o_ref):
    f32 = jnp.float32
    x = x_ref[...]                                    # (C_in, N*Lp), batch folded into lanes
    pos = pos_ref[...]                                # (1, N*Lp)  position inside each batch segment
    valid = pos < l_out                               # padded-tail mask

    def bn_relu_masked(h, bn):
        # training-mode BN over all valid columns (padded tails of h are zero), then ReLU + re-mask
        s = jnp.sum(h, axis=1, keepdims=True)
        sq = jnp.sum(h * h, axis=1, keepdims=True)
        mean = s * inv_count
        var = jnp.maximum(sq * inv_count - mean * mean, 0.0)
        scale = bn[:, 0:1] * lax.rsqrt(var + EPS)
        shift = bn[:, 1:2] - mean * scale
        a = jnp.maximum(h * scale + shift, 0.0)
        return jnp.where(valid, a, 0.0)

    # conv1 (1x1): padded x columns are zero and there is no bias -> stats stay clean
    h1 = jnp.dot(w1_ref[...], x, preferred_element_type=f32)
    a1 = bn_relu_masked(h1, bn1_ref[...])

    # conv2 (k=3, padding=1): neighbour taps via positive-shift lane rotations + boundary masks
    total = a1.shape[1]
    prev = pltpu.roll(a1, shift=1, axis=1)            # prev[l] = a1[l-1]
    prev = jnp.where(pos == 0, 0.0, prev)             # zero-pad at each segment start
    nxt = pltpu.roll(a1, shift=total - 1, axis=1)     # nxt[l] = a1[l+1]
    nxt = jnp.where(pos == lp - 1, 0.0, nxt)          # zero-pad at each segment end
    h2 = (jnp.dot(w21_ref[...], a1, preferred_element_type=f32)
          + jnp.dot(w20_ref[...], prev, preferred_element_type=f32)
          + jnp.dot(w22_ref[...], nxt, preferred_element_type=f32))
    h2 = jnp.where(valid, h2, 0.0)
    a2 = bn_relu_masked(h2, bn2_ref[...])

    # conv3 (1x1)
    h3 = jnp.dot(w3_ref[...], a2, preferred_element_type=f32)
    bn3 = bn3_ref[...]                                # (C_out, 3) = [gamma, beta, residual bias]
    a3 = bn_relu_masked(h3, bn3)

    # residual 1x1 conv + add
    res = jnp.dot(wr_ref[...], x, preferred_element_type=f32) + bn3[:, 2:3]
    o_ref[...] = (a3 + res).astype(o_ref.dtype)


def _fused_forward(xs, params, l_out, count):
    n, c_in, _ = xs.shape
    c_hid = params["w1"].shape[0]
    c_out = params["w3"].shape[0]
    f32 = jnp.float32

    lp = max(_LANE, _round_up(l_out, _LANE))
    total = n * lp
    xs = jnp.pad(xs, ((0, 0), (0, 0), (0, lp - l_out)))
    xf = xs.transpose(1, 0, 2).reshape(c_in, total).astype(f32)          # (C_in, N*Lp)
    pos = jnp.tile(jnp.arange(lp, dtype=jnp.int32), n).reshape(1, total)

    w1 = params["w1"].astype(f32)
    w20 = params["w2"][:, :, 0].astype(f32)
    w21 = params["w2"][:, :, 1].astype(f32)
    w22 = params["w2"][:, :, 2].astype(f32)
    w3 = params["w3"].astype(f32)
    wr = params["wr"].astype(f32)
    bn1 = jnp.stack([params["g1"], params["be1"]], axis=1).astype(f32)
    bn2 = jnp.stack([params["g2"], params["be2"]], axis=1).astype(f32)
    bn3 = jnp.stack([params["g3"], params["be3"], params["br"]], axis=1).astype(f32)

    full = lambda a: pl.BlockSpec(a.shape, lambda i: (0,) * a.ndim)
    est = 4 * total * (3 * c_in + 6 * c_hid + 4 * c_out)
    vmem = int(min(48 * 2**20, max(16 * 2**20, 2 * est + (4 << 20))))

    out_f = pl.pallas_call(
        functools.partial(_fused_kernel, l_out, lp, 1.0 / count),
        grid=(1,),
        in_specs=[full(xf), full(pos), full(w1), full(w20), full(w21), full(w22),
                  full(w3), full(wr), full(bn1), full(bn2), full(bn3)],
        out_specs=pl.BlockSpec((c_out, total), lambda i: (0, 0)),
        out_shape=jax.ShapeDtypeStruct((c_out, total), f32),
        compiler_params=pltpu.CompilerParams(dimension_semantics=("arbitrary",),
                                             vmem_limit_bytes=vmem),
    )(xf, pos, w1, w20, w21, w22, w3, wr, bn1, bn2, bn3)

    return out_f.reshape(c_out, n, lp)[:, :, :l_out].transpose(1, 0, 2)


# ============================ tiled multi-pass fallback ============================
def _conv1_kernel(x_ref, w1_ref, h1_ref, st_ref):
    # conv1 (1x1) + per-tile BN1 partial stats (x padded tail is zero, no bias -> stats clean)
    h1 = jnp.dot(w1_ref[...], x_ref[...], preferred_element_type=jnp.float32)
    h1_ref[...] = h1.astype(h1_ref.dtype)
    s = jnp.sum(h1, axis=1, keepdims=True)
    sq = jnp.sum(h1 * h1, axis=1, keepdims=True)
    st_ref[...] = jnp.concatenate([s, sq], axis=1)


def _conv2_kernel(l_out, l_tile, h1_ref, hp_ref, hn_ref, ss1_ref, w20_ref, w21_ref, w22_ref,
                  h2_ref, st_ref):
    # BN1 apply + ReLU + conv2 (k=3, padding=1) with a 1-column halo across L tiles + BN2 stats
    f32 = jnp.float32
    j = pl.program_id(1)
    ss1 = ss1_ref[...]
    scale, shift = ss1[:, 0:1], ss1[:, 1:2]
    lane = lax.broadcasted_iota(jnp.int32, (1, l_tile), 1)
    col = j * l_tile + lane

    a1 = jnp.maximum(h1_ref[...].astype(f32) * scale + shift, 0.0)
    a1 = jnp.where(col < l_out, a1, 0.0)

    pcol = jnp.maximum(hp_ref[...].astype(f32) * scale + shift, 0.0)      # h1[:, j*l_tile-1]
    pcol = jnp.where(j > 0, pcol, 0.0)
    ncol = jnp.maximum(hn_ref[...].astype(f32) * scale + shift, 0.0)      # h1[:, (j+1)*l_tile]
    ncol = jnp.where(j < pl.num_programs(1) - 1, ncol, 0.0)

    prev = pltpu.roll(a1, shift=1, axis=1)
    prev = jnp.where(lane == 0, pcol, prev)
    nxt = pltpu.roll(a1, shift=l_tile - 1, axis=1)
    nxt = jnp.where(lane == l_tile - 1, ncol, nxt)

    h2 = (jnp.dot(w21_ref[...], a1, preferred_element_type=f32)
          + jnp.dot(w20_ref[...], prev, preferred_element_type=f32)
          + jnp.dot(w22_ref[...], nxt, preferred_element_type=f32))
    h2 = jnp.where(col < l_out, h2, 0.0)
    h2_ref[...] = h2.astype(h2_ref.dtype)
    s = jnp.sum(h2, axis=1, keepdims=True)
    sq = jnp.sum(h2 * h2, axis=1, keepdims=True)
    st_ref[...] = jnp.concatenate([s, sq], axis=1)


def _conv3_kernel(l_out, l_tile, h2_ref, ss2_ref, w3_ref, h3_ref, st_ref):
    # BN2 apply + ReLU + conv3 (1x1) + BN3 partial stats
    f32 = jnp.float32
    j = pl.program_id(1)
    ss2 = ss2_ref[...]
    col = j * l_tile + lax.broadcasted_iota(jnp.int32, (1, l_tile), 1)
    a2 = jnp.maximum(h2_ref[...].astype(f32) * ss2[:, 0:1] + ss2[:, 1:2], 0.0)
    a2 = jnp.where(col < l_out, a2, 0.0)
    h3 = jnp.dot(w3_ref[...], a2, preferred_element_type=f32)
    h3_ref[...] = h3.astype(h3_ref.dtype)
    s = jnp.sum(h3, axis=1, keepdims=True)
    sq = jnp.sum(h3 * h3, axis=1, keepdims=True)
    st_ref[...] = jnp.concatenate([s, sq], axis=1)


def _output_kernel(x_ref, h3_ref, ss3_ref, wr_ref, o_ref):
    # BN3 apply + ReLU + residual 1x1 conv + add
    f32 = jnp.float32
    ss3 = ss3_ref[...]                                 # (C_out, 3) = [scale, shift, residual bias]
    a3 = jnp.maximum(h3_ref[...].astype(f32) * ss3[:, 0:1] + ss3[:, 1:2], 0.0)
    r = jnp.dot(wr_ref[...], x_ref[...], preferred_element_type=f32) + ss3[:, 2:3]
    o_ref[...] = (a3 + r).astype(o_ref.dtype)


def _bn_scale_shift(st, gamma, beta, count):
    """Per-channel (sum, sumsq) -> packed (C, 2) [scale, shift] for training-mode BatchNorm."""
    mean = st[:, 0] / count
    var = jnp.maximum(st[:, 1] / count - mean * mean, 0.0)
    scale = gamma.astype(jnp.float32) * lax.rsqrt(var + EPS)
    shift = beta.astype(jnp.float32) - mean * scale
    return jnp.stack([scale, shift], axis=1)


def _tiled_forward(xs, params, l_out, count, max_l_tile):
    n, c_in, _ = xs.shape
    c_hid = params["w1"].shape[0]
    c_out = params["w3"].shape[0]
    f32 = jnp.float32
    act = jnp.bfloat16          # inter-pass intermediates; stats / BN / accumulation stay f32

    # Largest 128-multiple L tile under a VMEM budget; pad L up to a tile multiple (masked in-kernel).
    c_big = max(c_in, c_hid, c_out)
    cap = max(_LANE, (16 * 2**20) // (32 * c_big) // _LANE * _LANE)
    l_tile = int(min(max_l_tile, cap, _round_up(l_out, _LANE)))
    l_tile = max(_LANE, (l_tile // _LANE) * _LANE)
    l_pad = _round_up(l_out, l_tile)
    n_lt = l_pad // l_tile
    if l_pad != l_out:
        xs = jnp.pad(xs, ((0, 0), (0, 0), (0, l_pad - l_out)))

    w1 = params["w1"].astype(f32)
    w20 = params["w2"][:, :, 0].astype(f32)
    w21 = params["w2"][:, :, 1].astype(f32)
    w22 = params["w2"][:, :, 2].astype(f32)
    w3 = params["w3"].astype(f32)
    wr = params["wr"].astype(f32)

    tile = lambda c: pl.BlockSpec((None, c, l_tile), lambda i, j: (i, 0, j))
    full = lambda a: pl.BlockSpec(a.shape, lambda i, j: (0,) * a.ndim)
    stat = lambda c: pl.BlockSpec((None, None, c, 2), lambda i, j: (i, j, 0, 0))
    halo = lambda c: pl.BlockSpec((None, None, c, 1), lambda i, j: (i, j, 0, 0))
    stat_shape = lambda c: jax.ShapeDtypeStruct((n, n_lt, c, 2), f32)

    cp = pltpu.CompilerParams(dimension_semantics=("parallel", "parallel"),
                              vmem_limit_bytes=32 * 2**20)
    grid = (n, n_lt)

    # ---- pass 1: conv1 + BN1 partial stats ----
    h1, st1 = pl.pallas_call(
        _conv1_kernel, grid=grid,
        in_specs=[tile(c_in), full(w1)],
        out_specs=[tile(c_hid), stat(c_hid)],
        out_shape=[jax.ShapeDtypeStruct((n, c_hid, l_pad), act), stat_shape(c_hid)],
        compiler_params=cp,
    )(xs, w1)
    ss1 = _bn_scale_shift(st1.sum(axis=(0, 1)), params["g1"], params["be1"], count)

    # halo columns for the k=3 conv: h1[:, :, j*l_tile-1] and h1[:, :, (j+1)*l_tile]
    zcol = jnp.zeros((n, c_hid, 1), h1.dtype)
    hp = jnp.concatenate([zcol, h1[:, :, l_tile - 1:-1:l_tile]], axis=2)
    hn = jnp.concatenate([h1[:, :, l_tile::l_tile], zcol], axis=2)
    hp = hp.transpose(0, 2, 1)[..., None]              # (n, n_lt, c_hid, 1)
    hn = hn.transpose(0, 2, 1)[..., None]

    # ---- pass 2: BN1 apply + ReLU + conv2 (k=3, halo) + BN2 partial stats ----
    h2, st2 = pl.pallas_call(
        functools.partial(_conv2_kernel, l_out, l_tile), grid=grid,
        in_specs=[tile(c_hid), halo(c_hid), halo(c_hid), full(ss1),
                  full(w20), full(w21), full(w22)],
        out_specs=[tile(c_hid), stat(c_hid)],
        out_shape=[jax.ShapeDtypeStruct((n, c_hid, l_pad), act), stat_shape(c_hid)],
        compiler_params=cp,
    )(h1, hp, hn, ss1, w20, w21, w22)
    ss2 = _bn_scale_shift(st2.sum(axis=(0, 1)), params["g2"], params["be2"], count)

    # ---- pass 3: BN2 apply + ReLU + conv3 + BN3 partial stats ----
    h3, st3 = pl.pallas_call(
        functools.partial(_conv3_kernel, l_out, l_tile), grid=grid,
        in_specs=[tile(c_hid), full(ss2), full(w3)],
        out_specs=[tile(c_out), stat(c_out)],
        out_shape=[jax.ShapeDtypeStruct((n, c_out, l_pad), act), stat_shape(c_out)],
        compiler_params=cp,
    )(h2, ss2, w3)
    ss3 = _bn_scale_shift(st3.sum(axis=(0, 1)), params["g3"], params["be3"], count)
    ss3 = jnp.concatenate([ss3, params["br"].astype(f32)[:, None]], axis=1)

    # ---- pass 4: BN3 apply + ReLU + residual conv + add ----
    out = pl.pallas_call(
        _output_kernel, grid=grid,
        in_specs=[tile(c_in), tile(c_out), full(ss3), full(wr)],
        out_specs=tile(c_out),
        out_shape=jax.ShapeDtypeStruct((n, c_out, l_pad), f32),
        compiler_params=cp,
    )(xs, h3, ss3, wr)
    return out[:, :, :l_out]


# ==================================== entry point ====================================
def bottleneck_forward(x, params, stride, *, use_fused=None, max_l_tile=4096):
    """x: (N, C_in, L) NCW (PyTorch layout). Returns (N, C_out, L_out) NCW."""
    n = x.shape[0]
    c_out = params["w3"].shape[0]
    if "wr" not in params:        # in_channels == out_channels -> identity residual in the module
        params = dict(params)
        params["wr"] = jnp.eye(c_out, dtype=jnp.float32)
        params["br"] = jnp.zeros((c_out,), jnp.float32)
    c_in = params["wr"].shape[1]
    c_hid = params["w1"].shape[0]

    xs = x[:, :, ::stride].astype(jnp.float32)          # stride of the 1x1 convs == subsample L
    l_out = xs.shape[2]
    count = n * l_out

    lp = max(_LANE, _round_up(l_out, _LANE))
    est_fused = 4 * n * lp * (3 * c_in + 6 * c_hid + 4 * c_out)
    if use_fused is None:
        use_fused = est_fused <= 10 * 2**20              # conservative for v7x's 64 MiB VMEM
    if use_fused:
        return _fused_forward(xs, params, l_out, count)
    return _tiled_forward(xs, params, l_out, count, max_l_tile)


def make_params(key, c_in, c_hid, c_out):
    ks = jax.random.split(key, 14)
    s = 0.1
    # b1/b2/b3 mirror the PyTorch Conv1d biases; they are mathematically no-ops in the fused
    # forward (bias before training-mode BN cancels) and are only used by the pure-JAX reference.
    return {
        "w1": jax.random.normal(ks[0], (c_hid, c_in), jnp.float32) * s,
        "b1": jax.random.normal(ks[1], (c_hid,), jnp.float32) * s,
        "g1": 1.0 + jax.random.normal(ks[2], (c_hid,), jnp.float32) * s,
        "be1": jax.random.normal(ks[3], (c_hid,), jnp.float32) * s,
        "w2": jax.random.normal(ks[4], (c_hid, c_hid, 3), jnp.float32) * s,
        "b2": jax.random.normal(ks[5], (c_hid,), jnp.float32) * s,
        "g2": 1.0 + jax.random.normal(ks[6], (c_hid,), jnp.float32) * s,
        "be2": jax.random.normal(ks[7], (c_hid,), jnp.float32) * s,
        "w3": jax.random.normal(ks[8], (c_out, c_hid), jnp.float32) * s,
        "b3": jax.random.normal(ks[9], (c_out,), jnp.float32) * s,
        "g3": 1.0 + jax.random.normal(ks[10], (c_out,), jnp.float32) * s,
        "be3": jax.random.normal(ks[11], (c_out,), jnp.float32) * s,
        "wr": jax.random.normal(ks[12], (c_out, c_in), jnp.float32) * s,
        "br": jax.random.normal(ks[13], (c_out,), jnp.float32) * s,
    }


def bottleneck_reference(x, params, stride):
    """Pure-JAX reference implementing the PyTorch module's training-mode forward (with biases)."""
    def bn_relu(h, g, b):
        mean = jnp.mean(h, axis=(0, 2), keepdims=True)
        var = jnp.mean((h - mean) ** 2, axis=(0, 2), keepdims=True)
        return jax.nn.relu((h - mean) * lax.rsqrt(var + EPS) * g[None, :, None] + b[None, :, None])

    xs = x[:, :, ::stride]
    h = jnp.einsum("oi,nil->nol", params["w1"], xs) + params["b1"][None, :, None]
    h = bn_relu(h, params["g1"], params["be1"])
    hp = jnp.pad(h, ((0, 0), (0, 0), (1, 1)))
    h2 = (jnp.einsum("oi,nil->nol", params["w2"][:, :, 0], hp[:, :, :-2])
          + jnp.einsum("oi,nil->nol", params["w2"][:, :, 1], hp[:, :, 1:-1])
          + jnp.einsum("oi,nil->nol", params["w2"][:, :, 2], hp[:, :, 2:])
          + params["b2"][None, :, None])
    h2 = bn_relu(h2, params["g2"], params["be2"])
    h3 = jnp.einsum("oi,nil->nol", params["w3"], h2) + params["b3"][None, :, None]
    h3 = bn_relu(h3, params["g3"], params["be3"])
    r = jnp.einsum("oi,nil->nol", params["wr"], xs) + params["br"][None, :, None]
    return h3 + r


if __name__ == "__main__":
    # Bottleneck(in_channels=4, hid_channels=8, out_channels=16, down_sample=True)
    N, C_IN, C_HID, C_OUT, L = 2, 4, 8, 16, 16
    STRIDE = 2  # down_sample=True

    key = jax.random.PRNGKey(0)
    kx, kp = jax.random.split(key)
    x = jax.random.normal(kx, (N, C_IN, L), jnp.float32)   # NCW, like PyTorch Conv1d input
    params = make_params(kp, C_IN, C_HID, C_OUT)

    # fused single-kernel in-VMEM path (auto-selected at these shapes), f32 throughout
    out = jax.block_until_ready(bottleneck_forward(x, params, STRIDE))
    assert out.shape == (N, C_OUT, L // STRIDE), out.shape
    ref = bottleneck_reference(x, params, STRIDE)
    err = float(jnp.max(jnp.abs(out - ref)))
    assert err < 2e-3, f"fused path max abs error vs reference: {err}"

    # also exercise the tiled multi-pass fallback (bf16 intermediates, L tiling + k=3 halo)
    x2 = jax.random.normal(jax.random.PRNGKey(1), (3, C_IN, 437), jnp.float32)
    out2 = jax.block_until_ready(
        bottleneck_forward(x2, params, 1, use_fused=False, max_l_tile=128))
    assert out2.shape == (3, C_OUT, 437), out2.shape
    ref2 = bottleneck_reference(x2, params, 1)
    err2 = float(jnp.max(jnp.abs(out2 - ref2)))
    assert err2 < 5e-2, f"tiled path max abs error vs reference: {err2}"

    print("KERNEL_OK")
</pallas_src>

<mosaic_0001>
module attributes {stable_mosaic.version = 11 : i64} {
  func.func @_fused_kernel(%arg0: i32, %arg1: memref<4x256xf32, #tpu.memory_space<vmem>>, %arg2: memref<1x256xi32, #tpu.memory_space<vmem>>, %arg3: memref<8x4xf32, #tpu.memory_space<vmem>>, %arg4: memref<8x8xf32, #tpu.memory_space<vmem>>, %arg5: memref<8x8xf32, #tpu.memory_space<vmem>>, %arg6: memref<8x8xf32, #tpu.memory_space<vmem>>, %arg7: memref<16x8xf32, #tpu.memory_space<vmem>>, %arg8: memref<16x4xf32, #tpu.memory_space<vmem>>, %arg9: memref<8x2xf32, #tpu.memory_space<vmem>>, %arg10: memref<8x2xf32, #tpu.memory_space<vmem>>, %arg11: memref<16x3xf32, #tpu.memory_space<vmem>>, %arg12: memref<16x256xf32, #tpu.memory_space<vmem>>) attributes {dimension_semantics = [#tpu.dimension_semantics<arbitrary>], iteration_bounds = array<i64: 1>, scalar_prefetch = 0 : i64, scratch_operands = 0 : i64, tpu.core_type = #tpu.core_type<tc>, window_params = [{pipeline_mode = #tpu.pipeline_mode<synchronous>, transform_indices = @transform_0, window_bounds = array<i64: 4, 256>}, {pipeline_mode = #tpu.pipeline_mode<synchronous>, transform_indices = @transform_1, window_bounds = array<i64: 1, 256>}, {pipeline_mode = #tpu.pipeline_mode<synchronous>, transform_indices = @transform_2, window_bounds = array<i64: 8, 4>}, {pipeline_mode = #tpu.pipeline_mode<synchronous>, transform_indices = @transform_3, window_bounds = array<i64: 8, 8>}, {pipeline_mode = #tpu.pipeline_mode<synchronous>, transform_indices = @transform_4, window_bounds = array<i64: 8, 8>}, {pipeline_mode = #tpu.pipeline_mode<synchronous>, transform_indices = @transform_5, window_bounds = array<i64: 8, 8>}, {pipeline_mode = #tpu.pipeline_mode<synchronous>, transform_indices = @transform_6, window_bounds = array<i64: 16, 8>}, {pipeline_mode = #tpu.pipeline_mode<synchronous>, transform_indices = @transform_7, window_bounds = array<i64: 16, 4>}, {pipeline_mode = #tpu.pipeline_mode<synchronous>, transform_indices = @transform_8, window_bounds = array<i64: 8, 2>}, {pipeline_mode = #tpu.pipeline_mode<synchronous>, transform_indices = @transform_9, window_bounds = array<i64: 8, 2>}, {pipeline_mode = #tpu.pipeline_mode<synchronous>, transform_indices = @transform_10, window_bounds = array<i64: 16, 3>}, {pipeline_mode = #tpu.pipeline_mode<synchronous>, transform_indices = @transform_11, window_bounds = array<i64: 16, 256>}]} {
    %c0 = arith.constant 0 : index
    %c0_0 = arith.constant 0 : index
    %0 = vector.load %arg1[%c0, %c0_0] : memref<4x256xf32, #tpu.memory_space<vmem>>, vector<4x256xf32>
    %c0_1 = arith.constant 0 : index
    %c0_2 = arith.constant 0 : index
    %1 = vector.load %arg2[%c0_1, %c0_2] : memref<1x256xi32, #tpu.memory_space<vmem>>, vector<1x256xi32>
    %c8_i32 = arith.constant 8 : i32
    %2 = vector.broadcast %c8_i32 : i32 to vector<1x256xi32>
    %3 = arith.cmpi slt, %1, %2 : vector<1x256xi32>
    %c0_3 = arith.constant 0 : index
    %c0_4 = arith.constant 0 : index
    %4 = vector.load %arg3[%c0_3, %c0_4] : memref<8x4xf32, #tpu.memory_space<vmem>>, vector<8x4xf32>
    %cst = arith.constant dense<0.000000e+00> : vector<8x256xf32>
    %5 = tpu.matmul %4, %0, %cst {dimension_numbers = #tpu.dot_dimension_numbers<[1], [0], [0], [1], [0, 0, 1, 1], [], []>} : vector<8x4xf32>, vector<4x256xf32>, vector<8x256xf32> -> vector<8x256xf32>
    %c0_5 = arith.constant 0 : index
    %c0_6 = arith.constant 0 : index
    %6 = vector.load %arg9[%c0_5, %c0_6] : memref<8x2xf32, #tpu.memory_space<vmem>>, vector<8x2xf32>
    %cst_7 = arith.constant dense<0.000000e+00> : vector<8xf32>
    %7 = vector.multi_reduction <add>, %5, %cst_7 [1] : vector<8x256xf32> to vector<8xf32>
    %8 = vector.shape_cast %7 : vector<8xf32> to vector<8x1xf32>
    %9 = arith.mulf %5, %5 : vector<8x256xf32>
    %cst_8 = arith.constant dense<0.000000e+00> : vector<8xf32>
    %10 = vector.multi_reduction <add>, %9, %cst_8 [1] : vector<8x256xf32> to vector<8xf32>
    %11 = vector.shape_cast %10 : vector<8xf32> to vector<8x1xf32>
    %cst_9 = arith.constant 6.250000e-02 : f32
    %12 = vector.broadcast %cst_9 : f32 to vector<8x1xf32>
    %13 = arith.mulf %8, %12 : vector<8x1xf32>
    %cst_10 = arith.constant 6.250000e-02 : f32
    %14 = vector.broadcast %cst_10 : f32 to vector<8x1xf32>
    %15 = arith.mulf %11, %14 : vector<8x1xf32>
    %16 = arith.mulf %13, %13 : vector<8x1xf32>
    %17 = arith.subf %15, %16 : vector<8x1xf32>
    %cst_11 = arith.constant 0.000000e+00 : f32
    %18 = vector.broadcast %cst_11 : f32 to vector<8x1xf32>
    %19 = arith.maximumf %17, %18 : vector<8x1xf32>
    %20 = vector.extract_strided_slice %6 {offsets = [0, 0], sizes = [8, 1], strides = [1, 1]} : vector<8x2xf32> to vector<8x1xf32>
    %cst_12 = arith.constant 9.99999974E-6 : f32
    %21 = vector.broadcast %cst_12 : f32 to vector<8x1xf32>
    %22 = arith.addf %19, %21 : vector<8x1xf32>
    %23 = math.rsqrt %22 : vector<8x1xf32>
    %24 = arith.mulf %20, %23 : vector<8x1xf32>
    %25 = vector.extract_strided_slice %6 {offsets = [0, 1], sizes = [8, 1], strides = [1, 1]} : vector<8x2xf32> to vector<8x1xf32>
    %26 = arith.mulf %13, %24 : vector<8x1xf32>
    %27 = arith.subf %25, %26 : vector<8x1xf32>
    %28 = vector.broadcast %24 : vector<8x1xf32> to vector<8x256xf32>
    %29 = arith.mulf %5, %28 : vector<8x256xf32>
    %30 = vector.broadcast %27 : vector<8x1xf32> to vector<8x256xf32>
    %31 = arith.addf %29, %30 : vector<8x256xf32>
    %cst_13 = arith.constant 0.000000e+00 : f32
    %32 = vector.broadcast %cst_13 : f32 to vector<8x256xf32>
    %33 = arith.maximumf %31, %32 : vector<8x256xf32>
    %cst_14 = arith.constant 0.000000e+00 : f32
    %34 = vector.shape_cast %3 : vector<1x256xi1> to vector<1x256xi1>
    %35 = vector.broadcast %34 : vector<1x256xi1> to vector<8x256xi1>
    %36 = vector.broadcast %cst_14 : f32 to vector<8x256xf32>
    %37 = arith.select %35, %33, %36 : vector<8x256xi1>, vector<8x256xf32>
    %c1_i32 = arith.constant 1 : i32
    %38 = tpu.dynamic_rotate %37 by %c1_i32 dim 1 : vector<8x256xf32>, i32 -> vector<8x256xf32>
    %c0_i32 = arith.constant 0 : i32
    %39 = vector.broadcast %c0_i32 : i32 to vector<1x256xi32>
    %40 = arith.cmpi eq, %1, %39 : vector<1x256xi32>
    %cst_15 = arith.constant 0.000000e+00 : f32
    %41 = vector.shape_cast %40 : vector<1x256xi1> to vector<1x256xi1>
    %42 = vector.broadcast %41 : vector<1x256xi1> to vector<8x256xi1>
    %43 = vector.broadcast %cst_15 : f32 to vector<8x256xf32>
    %44 = arith.select %42, %43, %38 : vector<8x256xi1>, vector<8x256xf32>
    %c255_i32 = arith.constant 255 : i32
    %45 = tpu.dynamic_rotate %37 by %c255_i32 dim 1 : vector<8x256xf32>, i32 -> vector<8x256xf32>
    %c127_i32 = arith.constant 127 : i32
    %46 = vector.broadcast %c127_i32 : i32 to vector<1x256xi32>
    %47 = arith.cmpi eq, %1, %46 : vector<1x256xi32>
    %cst_16 = arith.constant 0.000000e+00 : f32
    %48 = vector.shape_cast %47 : vector<1x256xi1> to vector<1x256xi1>
    %49 = vector.broadcast %48 : vector<1x256xi1> to vector<8x256xi1>
    %50 = vector.broadcast %cst_16 : f32 to vector<8x256xf32>
    %51 = arith.select %49, %50, %45 : vector<8x256xi1>, vector<8x256xf32>
    %c0_17 = arith.constant 0 : index
    %c0_18 = arith.constant 0 : index
    %52 = vector.load %arg5[%c0_17, %c0_18] : memref<8x8xf32, #tpu.memory_space<vmem>>, vector<8x8xf32>
    %cst_19 = arith.constant dense<0.000000e+00> : vector<8x256xf32>
    %53 = tpu.matmul %52, %37, %cst_19 {dimension_numbers = #tpu.dot_dimension_numbers<[1], [0], [0], [1], [0, 0, 1, 1], [], []>} : vector<8x8xf32>, vector<8x256xf32>, vector<8x256xf32> -> vector<8x256xf32>
    %c0_20 = arith.constant 0 : index
    %c0_21 = arith.constant 0 : index
    %54 = vector.load %arg4[%c0_20, %c0_21] : memref<8x8xf32, #tpu.memory_space<vmem>>, vector<8x8xf32>
    %cst_22 = arith.constant dense<0.000000e+00> : vector<8x256xf32>
    %55 = tpu.matmul %54, %44, %cst_22 {dimension_numbers = #tpu.dot_dimension_numbers<[1], [0], [0], [1], [0, 0, 1, 1], [], []>} : vector<8x8xf32>, vector<8x256xf32>, vector<8x256xf32> -> vector<8x256xf32>
    %56 = arith.addf %53, %55 : vector<8x256xf32>
    %c0_23 = arith.constant 0 : index
    %c0_24 = arith.constant 0 : index
    %57 = vector.load %arg6[%c0_23, %c0_24] : memref<8x8xf32, #tpu.memory_space<vmem>>, vector<8x8xf32>
    %cst_25 = arith.constant dense<0.000000e+00> : vector<8x256xf32>
    %58 = tpu.matmul %57, %51, %cst_25 {dimension_numbers = #tpu.dot_dimension_numbers<[1], [0], [0], [1], [0, 0, 1, 1], [], []>} : vector<8x8xf32>, vector<8x256xf32>, vector<8x256xf32> -> vector<8x256xf32>
    %59 = arith.addf %56, %58 : vector<8x256xf32>
    %cst_26 = arith.constant 0.000000e+00 : f32
    %60 = vector.shape_cast %3 : vector<1x256xi1> to vector<1x256xi1>
    %61 = vector.broadcast %60 : vector<1x256xi1> to vector<8x256xi1>
    %62 = vector.broadcast %cst_26 : f32 to vector<8x256xf32>
    %63 = arith.select %61, %59, %62 : vector<8x256xi1>, vector<8x256xf32>
    %c0_27 = arith.constant 0 : index
    %c0_28 = arith.constant 0 : index
    %64 = vector.load %arg10[%c0_27, %c0_28] : memref<8x2xf32, #tpu.memory_space<vmem>>, vector<8x2xf32>
    %cst_29 = arith.constant dense<0.000000e+00> : vector<8xf32>
    %65 = vector.multi_reduction <add>, %63, %cst_29 [1] : vector<8x256xf32> to vector<8xf32>
    %66 = vector.shape_cast %65 : vector<8xf32> to vector<8x1xf32>
    %67 = arith.mulf %63, %63 : vector<8x256xf32>
    %cst_30 = arith.constant dense<0.000000e+00> : vector<8xf32>
    %68 = vector.multi_reduction <add>, %67, %cst_30 [1] : vector<8x256xf32> to vector<8xf32>
    %69 = vector.shape_cast %68 : vector<8xf32> to vector<8x1xf32>
    %cst_31 = arith.constant 6.250000e-02 : f32
    %70 = vector.broadcast %cst_31 : f32 to vector<8x1xf32>
    %71 = arith.mulf %66, %70 : vector<8x1xf32>
    %cst_32 = arith.constant 6.250000e-02 : f32
    %72 = vector.broadcast %cst_32 : f32 to vector<8x1xf32>
    %73 = arith.mulf %69, %72 : vector<8x1xf32>
    %74 = arith.mulf %71, %71 : vector<8x1xf32>
    %75 = arith.subf %73, %74 : vector<8x1xf32>
    %cst_33 = arith.constant 0.000000e+00 : f32
    %76 = vector.broadcast %cst_33 : f32 to vector<8x1xf32>
    %77 = arith.maximumf %75, %76 : vector<8x1xf32>
    %78 = vector.extract_strided_slice %64 {offsets = [0, 0], sizes = [8, 1], strides = [1, 1]} : vector<8x2xf32> to vector<8x1xf32>
    %cst_34 = arith.constant 9.99999974E-6 : f32
    %79 = vector.broadcast %cst_34 : f32 to vector<8x1xf32>
    %80 = arith.addf %77, %79 : vector<8x1xf32>
    %81 = math.rsqrt %80 : vector<8x1xf32>
    %82 = arith.mulf %78, %81 : vector<8x1xf32>
    %83 = vector.extract_strided_slice %64 {offsets = [0, 1], sizes = [8, 1], strides = [1, 1]} : vector<8x2xf32> to vector<8x1xf32>
    %84 = arith.mulf %71, %82 : vector<8x1xf32>
    %85 = arith.subf %83, %84 : vector<8x1xf32>
    %86 = vector.broadcast %82 : vector<8x1xf32> to vector<8x256xf32>
    %87 = arith.mulf %63, %86 : vector<8x256xf32>
    %88 = vector.broadcast %85 : vector<8x1xf32> to vector<8x256xf32>
    %89 = arith.addf %87, %88 : vector<8x256xf32>
    %cst_35 = arith.constant 0.000000e+00 : f32
    %90 = vector.broadcast %cst_35 : f32 to vector<8x256xf32>
    %91 = arith.maximumf %89, %90 : vector<8x256xf32>
    %cst_36 = arith.constant 0.000000e+00 : f32
    %92 = vector.shape_cast %3 : vector<1x256xi1> to vector<1x256xi1>
    %93 = vector.broadcast %92 : vector<1x256xi1> to vector<8x256xi1>
    %94 = vector.broadcast %cst_36 : f32 to vector<8x256xf32>
    %95 = arith.select %93, %91, %94 : vector<8x256xi1>, vector<8x256xf32>
    %c0_37 = arith.constant 0 : index
    %c0_38 = arith.constant 0 : index
    %96 = vector.load %arg7[%c0_37, %c0_38] : memref<16x8xf32, #tpu.memory_space<vmem>>, vector<16x8xf32>
    %cst_39 = arith.constant dense<0.000000e+00> : vector<16x256xf32>
    %97 = tpu.matmul %96, %95, %cst_39 {dimension_numbers = #tpu.dot_dimension_numbers<[1], [0], [0], [1], [0, 0, 1, 1], [], []>} : vector<16x8xf32>, vector<8x256xf32>, vector<16x256xf32> -> vector<16x256xf32>
    %c0_40 = arith.constant 0 : index
    %c0_41 = arith.constant 0 : index
    %98 = vector.load %arg11[%c0_40, %c0_41] : memref<16x3xf32, #tpu.memory_space<vmem>>, vector<16x3xf32>
    %cst_42 = arith.constant dense<0.000000e+00> : vector<16xf32>
    %99 = vector.multi_reduction <add>, %97, %cst_42 [1] : vector<16x256xf32> to vector<16xf32>
    %100 = vector.shape_cast %99 : vector<16xf32> to vector<16x1xf32>
    %101 = arith.mulf %97, %97 : vector<16x256xf32>
    %cst_43 = arith.constant dense<0.000000e+00> : vector<16xf32>
    %102 = vector.multi_reduction <add>, %101, %cst_43 [1] : vector<16x256xf32> to vector<16xf32>
    %103 = vector.shape_cast %102 : vector<16xf32> to vector<16x1xf32>
    %cst_44 = arith.constant 6.250000e-02 : f32
    %104 = vector.broadcast %cst_44 : f32 to vector<16x1xf32>
    %105 = arith.mulf %100, %104 : vector<16x1xf32>
    %cst_45 = arith.constant 6.250000e-02 : f32
    %106 = vector.broadcast %cst_45 : f32 to vector<16x1xf32>
    %107 = arith.mulf %103, %106 : vector<16x1xf32>
    %108 = arith.mulf %105, %105 : vector<16x1xf32>
    %109 = arith.subf %107, %108 : vector<16x1xf32>
    %cst_46 = arith.constant 0.000000e+00 : f32
    %110 = vector.broadcast %cst_46 : f32 to vector<16x1xf32>
    %111 = arith.maximumf %109, %110 : vector<16x1xf32>
    %112 = vector.extract_strided_slice %98 {offsets = [0, 0], sizes = [16, 1], strides = [1, 1]} : vector<16x3xf32> to vector<16x1xf32>
    %cst_47 = arith.constant 9.99999974E-6 : f32
    %113 = vector.broadcast %cst_47 : f32 to vector<16x1xf32>
    %114 = arith.addf %111, %113 : vector<16x1xf32>
    %115 = math.rsqrt %114 : vector<16x1xf32>
    %116 = arith.mulf %112, %115 : vector<16x1xf32>
    %117 = vector.extract_strided_slice %98 {offsets = [0, 1], sizes = [16, 1], strides = [1, 1]} : vector<16x3xf32> to vector<16x1xf32>
    %118 = arith.mulf %105, %116 : vector<16x1xf32>
    %119 = arith.subf %117, %118 : vector<16x1xf32>
    %120 = vector.broadcast %116 : vector<16x1xf32> to vector<16x256xf32>
    %121 = arith.mulf %97, %120 : vector<16x256xf32>
    %122 = vector.broadcast %119 : vector<16x1xf32> to vector<16x256xf32>
    %123 = arith.addf %121, %122 : vector<16x256xf32>
    %cst_48 = arith.constant 0.000000e+00 : f32
    %124 = vector.broadcast %cst_48 : f32 to vector<16x256xf32>
    %125 = arith.maximumf %123, %124 : vector<16x256xf32>
    %cst_49 = arith.constant 0.000000e+00 : f32
    %126 = vector.shape_cast %3 : vector<1x256xi1> to vector<1x256xi1>
    %127 = vector.broadcast %126 : vector<1x256xi1> to vector<16x256xi1>
    %128 = vector.broadcast %cst_49 : f32 to vector<16x256xf32>
    %129 = arith.select %127, %125, %128 : vector<16x256xi1>, vector<16x256xf32>
    %c0_50 = arith.constant 0 : index
    %c0_51 = arith.constant 0 : index
    %130 = vector.load %arg8[%c0_50, %c0_51] : memref<16x4xf32, #tpu.memory_space<vmem>>, vector<16x4xf32>
    %cst_52 = arith.constant dense<0.000000e+00> : vector<16x256xf32>
    %131 = tpu.matmul %130, %0, %cst_52 {dimension_numbers = #tpu.dot_dimension_numbers<[1], [0], [0], [1], [0, 0, 1, 1], [], []>} : vector<16x4xf32>, vector<4x256xf32>, vector<16x256xf32> -> vector<16x256xf32>
    %132 = vector.extract_strided_slice %98 {offsets = [0, 2], sizes = [16, 1], strides = [1, 1]} : vector<16x3xf32> to vector<16x1xf32>
    %133 = vector.broadcast %132 : vector<16x1xf32> to vector<16x256xf32>
    %134 = arith.addf %131, %133 : vector<16x256xf32>
    %135 = arith.addf %129, %134 : vector<16x256xf32>
    %c0_53 = arith.constant 0 : index
    %c0_54 = arith.constant 0 : index
    %136 = vector.load %arg12[%c0_53, %c0_54] : memref<16x256xf32, #tpu.memory_space<vmem>>, vector<16x256xf32>
    tpu.vector_store %arg12[%c0_53, %c0_54], %135 {strides = array<i32>} : memref<16x256xf32, #tpu.memory_space<vmem>>, vector<16x256xf32>,
    return
  }
  func.func @transform_0(%arg0: i32) -> (i32, i32) {
    %c0_i32 = arith.constant 0 : i32
    %c0_i32_0 = arith.constant 0 : i32
    %c0_i32_1 = arith.constant 0 : i32
    return %c0_i32, %c0_i32_0 : i32, i32
  }
  func.func @transform_1(%arg0: i32) -> (i32, i32) {
    %c0_i32 = arith.constant 0 : i32
    %c0_i32_0 = arith.constant 0 : i32
    %c0_i32_1 = arith.constant 0 : i32
    return %c0_i32, %c0_i32_0 : i32, i32
  }
  func.func @transform_2(%arg0: i32) -> (i32, i32) {
    %c0_i32 = arith.constant 0 : i32
    %c0_i32_0 = arith.constant 0 : i32
    %c0_i32_1 = arith.constant 0 : i32
    return %c0_i32, %c0_i32_0 : i32, i32
  }
  func.func @transform_3(%arg0: i32) -> (i32, i32) {
    %c0_i32 = arith.constant 0 : i32
    %c0_i32_0 = arith.constant 0 : i32
    %c0_i32_1 = arith.constant 0 : i32
    return %c0_i32, %c0_i32_0 : i32, i32
  }
  func.func @transform_4(%arg0: i32) -> (i32, i32) {
    %c0_i32 = arith.constant 0 : i32
    %c0_i32_0 = arith.constant 0 : i32
    %c0_i32_1 = arith.constant 0 : i32
    return %c0_i32, %c0_i32_0 : i32, i32
  }
  func.func @transform_5(%arg0: i32) -> (i32, i32) {
    %c0_i32 = arith.constant 0 : i32
    %c0_i32_0 = arith.constant 0 : i32
    %c0_i32_1 = arith.constant 0 : i32
    return %c0_i32, %c0_i32_0 : i32, i32
  }
  func.func @transform_6(%arg0: i32) -> (i32, i32) {
    %c0_i32 = arith.constant 0 : i32
    %c0_i32_0 = arith.constant 0 : i32
    %c0_i32_1 = arith.constant 0 : i32
    return %c0_i32, %c0_i32_0 : i32, i32
  }
  func.func @transform_7(%arg0: i32) -> (i32, i32) {
    %c0_i32 = arith.constant 0 : i32
    %c0_i32_0 = arith.constant 0 : i32
    %c0_i32_1 = arith.constant 0 : i32
    return %c0_i32, %c0_i32_0 : i32, i32
  }
  func.func @transform_8(%arg0: i32) -> (i32, i32) {
    %c0_i32 = arith.constant 0 : i32
    %c0_i32_0 = arith.constant 0 : i32
    %c0_i32_1 = arith.constant 0 : i32
    return %c0_i32, %c0_i32_0 : i32, i32
  }
  func.func @transform_9(%arg0: i32) -> (i32, i32) {
    %c0_i32 = arith.constant 0 : i32
    %c0_i32_0 = arith.constant 0 : i32
    %c0_i32_1 = arith.constant 0 : i32
    return %c0_i32, %c0_i32_0 : i32, i32
  }
  func.func @transform_10(%arg0: i32) -> (i32, i32) {
    %c0_i32 = arith.constant 0 : i32
    %c0_i32_0 = arith.constant 0 : i32
    %c0_i32_1 = arith.constant 0 : i32
    return %c0_i32, %c0_i32_0 : i32, i32
  }
  func.func @transform_11(%arg0: i32) -> (i32, i32) {
    %c0_i32 = arith.constant 0 : i32
    %c0_i32_0 = arith.constant 0 : i32
    %c0_i32_1 = arith.constant 0 : i32
    return %c0_i32, %c0_i32_0 : i32, i32
  }
}

</mosaic_0001>

<llo_original>
// kernel: tpu_custom_call.1
$region0: #{tpu_custom_call.1}
  #allocation0 [shape = 'u32[]', space=smem, size = 0x4, offset = 0x4, fixed_abs, tag = 'smem constant byte address 0x4 - core index']
  #allocation1 [shape = 'u32[72,128]{1,0:T(1,128)}', space=vmem, size = 0x9000, scoped, tag = 'internal scratch']
  %s0 = inlined_call_operand.vmem [shape: f32[4,256], index: 0, kind: input, shape index: {}]
  %s1 = inlined_call_operand.vmem [shape: s32[1,256], index: 1, kind: input, shape index: {}]
  %s2 = inlined_call_operand.vmem [shape: f32[8,4], index: 2, kind: input, shape index: {}]
  %s3 = inlined_call_operand.vmem [shape: f32[8,8], index: 3, kind: input, shape index: {}]
  %s4 = inlined_call_operand.vmem [shape: f32[8,8], index: 4, kind: input, shape index: {}]
  %s5 = inlined_call_operand.vmem [shape: f32[8,8], index: 5, kind: input, shape index: {}]
  %s6 = inlined_call_operand.vmem [shape: f32[16,8], index: 6, kind: input, shape index: {}]
  %s7 = inlined_call_operand.vmem [shape: f32[16,4], index: 7, kind: input, shape index: {}]
  %s8 = inlined_call_operand.vmem [shape: f32[8,2], index: 8, kind: input, shape index: {}]
  %s9 = inlined_call_operand.vmem [shape: f32[8,2], index: 9, kind: input, shape index: {}]
  %s10 = inlined_call_operand.vmem [shape: f32[16,3], index: 10, kind: input, shape index: {}]
  %s11 = inlined_call_operand.hbm [shape: f32[16,256], index: 11, kind: output, shape index: {}]
  %s12 = sld [smem:[#allocation0]]
  $region54: #{tpu_custom_call.1} parent=0
    _
  %s14 = ssub.s32 1, %s12
  %s15 = scalar_select 0, %s14, %s12
  $region1: #{tpu_custom_call.1} parent=0
    #allocation2 [shape = 'u8[16384]{0}', space=vmem, size = 0x4000, scoped, tag = 'output window, operand 0, single buffered']
    #allocation3 [shape = 's32[1]{0}', space=sflag, size = 0x4, scoped, tag = 'scoped memory for tpu_custom_call.1']
    %16 = vsyncpa [#allocation3], 0
    // Predicated region
    $region2: #{tpu_custom_call.1} parent=1 // pred_check
      _
    $region3: #{tpu_custom_call.1} parent=1 // pred_check_branch
      %18 = sbr.rel (0) target = $region5
    $region4: #{tpu_custom_call.1} parent=1 // pred_region
      _
    $region5: #{tpu_custom_call.1} parent=1 // pred_fallthru
      _
    // Predicated region
    $region6: #{tpu_custom_call.1} parent=1 // pred_check
      _
    $region7: #{tpu_custom_call.1} parent=1 // pred_check_branch
      %20 = sbr.rel (0) target = $region9
    $region8: #{tpu_custom_call.1} parent=1 // pred_region
      _
    $region9: #{tpu_custom_call.1} parent=1 // pred_fallthru
      _
    // Predicated region
    $region10: #{tpu_custom_call.1} parent=1 // pred_check
      _
    $region11: #{tpu_custom_call.1} parent=1 // pred_check_branch
      %22 = sbr.rel (0) target = $region13
    $region12: #{tpu_custom_call.1} parent=1 // pred_region
      _
    $region13: #{tpu_custom_call.1} parent=1 // pred_fallthru
      _
    // Predicated region
    $region14: #{tpu_custom_call.1} parent=1 // pred_check
      _
    $region15: #{tpu_custom_call.1} parent=1 // pred_check_branch
      %24 = sbr.rel (0) target = $region17
    $region16: #{tpu_custom_call.1} parent=1 // pred_region
      _
    $region17: #{tpu_custom_call.1} parent=1 // pred_fallthru
      _
    // Predicated region
    $region18: #{tpu_custom_call.1} parent=1 // pred_check
      _
    $region19: #{tpu_custom_call.1} parent=1 // pred_check_branch
      %26 = sbr.rel (0) target = $region21
    $region20: #{tpu_custom_call.1} parent=1 // pred_region
      _
    $region21: #{tpu_custom_call.1} parent=1 // pred_fallthru
      _
    // Predicated region
    $region22: #{tpu_custom_call.1} parent=1 // pred_check
      _
    $region23: #{tpu_custom_call.1} parent=1 // pred_check_branch
      %28 = sbr.rel (0) target = $region25
    $region24: #{tpu_custom_call.1} parent=1 // pred_region
      _
    $region25: #{tpu_custom_call.1} parent=1 // pred_fallthru
      _
    // Predicated region
    $region26: #{tpu_custom_call.1} parent=1 // pred_check
      _
    $region27: #{tpu_custom_call.1} parent=1 // pred_check_branch
      %30 = sbr.rel (0) target = $region29
    $region28: #{tpu_custom_call.1} parent=1 // pred_region
      _
    $region29: #{tpu_custom_call.1} parent=1 // pred_fallthru
      _
    // Predicated region
    $region30: #{tpu_custom_call.1} parent=1 // pred_check
      _
    $region31: #{tpu_custom_call.1} parent=1 // pred_check_branch
      %32 = sbr.rel (0) target = $region33
    $region32: #{tpu_custom_call.1} parent=1 // pred_region
      _
    $region33: #{tpu_custom_call.1} parent=1 // pred_fallthru
      _
    // Predicated region
    $region34: #{tpu_custom_call.1} parent=1 // pred_check
      _
    $region35: #{tpu_custom_call.1} parent=1 // pred_check_branch
      %34 = sbr.rel (0) target = $region37
    $region36: #{tpu_custom_call.1} parent=1 // pred_region
      _
    $region37: #{tpu_custom_call.1} parent=1 // pred_fallthru
      _
    // Predicated region
    $region38: #{tpu_custom_call.1} parent=1 // pred_check
      _
    $region39: #{tpu_custom_call.1} parent=1 // pred_check_branch
      %36 = sbr.rel (0) target = $region41
    $region40: #{tpu_custom_call.1} parent=1 // pred_region
      _
    $region41: #{tpu_custom_call.1} parent=1 // pred_fallthru
      _
    // Predicated region
    $region42: #{tpu_custom_call.1} parent=1 // pred_check
      _
    $region43: #{tpu_custom_call.1} parent=1 // pred_check_branch
      %38 = sbr.rel (0) target = $region45
    $region44: #{tpu_custom_call.1} parent=1 // pred_region
      _
    $region45: #{tpu_custom_call.1} parent=1 // pred_fallthru
      _
    %v39 = vld [vmem:[%s0] sm:$0xff]
    %v40 = vld [vmem:[%s1] sm:$0x3]
    %vm41 = vcmp.lt.s32.totalorder %v40, 8
    %v42 = vld [vmem:[%s2] sm:$0xff]
    %44 = vst [vmem:[#allocation1] ss:$2 sm:$0xff] %v39
    %v45 = vld.sshfl [vmem:[#allocation1] sm:$0xff pattern:$0x75316420]
    %v46 = vld.sshfl [vmem:[#allocation1 + $0x8] sm:$0xff pattern:$0x75316420]
    %vm47 = vcmask 31744
    %v49 = vsel %vm47, %v42, 0
    %vm51 = vcmask 1043456
    %v52 = vsel %vm51, %v45, 0
    %v54 = vsel %vm51, %v46, 0
    %56 = vmatpush.msra.mxu0 0.0
    %57 = vmatpush.msra.mxu0 0.0
    %58 = vmatpush.msra.mxu0 0.0
    %59 = vmatpush.msra.mxu0 0.0
    %60 = vmatpush.msra.mxu0 0.0
    %61 = vmatpush.msra.mxu0 0.0
    %62 = vmatpush.msra.mxu0 0.0
    %63 = vmatpush.msra.mxu0 0.0
    %64 = vmatpush.msra.mxu0 0.0
    %65 = vmatpush.msra.mxu0 0.0
    %66 = vmatpush.msra.mxu0 0.0
    %67 = vmatpush.msra.mxu0 0.0
    %68 = vmatpush.msra.mxu0 0.0
    %69 = vmatpush.msra.mxu0 0.0
    %70 = vmatpush.msra.mxu0 0.0
    %71 = vmatpush.msra.mxu0 %v52
    %72 = vmatmul.f32.gmra.mxu0 %v49
    %v73 = vpop.f32.mrf.mxu0
    %v74 = vadd.f32 0.0, %v73
    %75 = vdwg.mxu0
    %76 = vmatpush.msra.mxu0 0.0
    %77 = vmatpush.msra.mxu0 0.0
    %78 = vmatpush.msra.mxu0 0.0
    %79 = vmatpush.msra.mxu0 0.0
    %80 = vmatpush.msra.mxu0 0.0
    %81 = vmatpush.msra.mxu0 0.0
    %82 = vmatpush.msra.mxu0 0.0
    %83 = vmatpush.msra.mxu0 0.0
    %84 = vmatpush.msra.mxu0 0.0
    %85 = vmatpush.msra.mxu0 0.0
    %86 = vmatpush.msra.mxu0 0.0
    %87 = vmatpush.msra.mxu0 0.0
    %88 = vmatpush.msra.mxu0 0.0
    %89 = vmatpush.msra.mxu0 0.0
    %90 = vmatpush.msra.mxu0 0.0
    %91 = vmatpush.msra.mxu0 %v54
    %92 = vmatmul.f32.gmra.mxu0 %v49
    %v93 = vpop.f32.mrf.mxu0
    %v94 = vadd.f32 0.0, %v93
    %95 = vdwg.mxu0
    %v96 = vld [vmem:[%s8] sm:$0xff]
    %v97 = vadd.f32 %v74, %v94
    %98 = vadd.xlane.f32.xlu0 %v97
    %v99 = vpop.xlane.xlu0 %98
    %v100 = vmul.f32 %v74, %v74
    %v101 = vmul.f32 %v94, %v94
    %v102 = vadd.f32 %v100, %v101
    %103 = vadd.xlane.f32.xlu0 %v102
    %v104 = vpop.xlane.xlu0 %103
    %v105 = vmul.f32 %v99, 0.0625
    %v106 = vmul.f32 %v104, 0.0625
    %v107 = vmul.f32 %v105, %v105
    %v108 = vsub.f32 %v106, %v107
    %v109 = vmax.f32 %v108, 0.0
    %v110 = vadd.f32 %v109, 1e-05
    %v111 = vrsqrt.pop %v110
    %v112 = vmul.f32 %v111, %v110
    %v113 = vmul.f32 %v112, %v111
    %v114 = vmul.f32 0.5, %v113
    %v115 = vsub.f32 1.5, %v114
    %v116 = vmul.f32 %v111, %v115
    %vm117 = vweird.f32 %v110
    %vm118 = vweird.f32 %v111
    %vm119 = vmor %vm117, %vm118
    %v120 = vsel %vm119, %v111, %v116
    %v121 = vmul.f32 %v96, %v120
    %v122 = vmul.f32 %v105, %v121
    %124 = vrot.lane.b32.xlu0 %v122, 1
    %v125 = vpop.permute.xlu0 %124
    %v127 = vsub.f32 %v96, %v125
    %129 = vset.pattern.permute.xlu0 0
    %130 = vperm.xlu0 %129, %v121
    %v131 = vpop.permute.xlu0 %130
    %v133 = vmul.f32 %v74, %v131
    %v134 = vmul.f32 %v94, %v131
    %136 = vset.pattern.permute.xlu0 1
    %137 = vperm.xlu0 %136, %v127
    %v138 = vpop.permute.xlu0 %137
    %v140 = vadd.f32 %v133, %v138
    %v141 = vadd.f32 %v134, %v138
    %v142 = vmax.f32 %v140, 0.0
    %v143 = vmax.f32 %v141, 0.0
    %v144 = vsel %vm41, 1, 0
    %v145 = vperm.slane %v144, 0
    %v146 = vperm.slane %v144, 1
    %vm147 = vcmp.eq.s32.totalorder %v145, 1
    %vm148 = vcmp.eq.s32.totalorder %v146, 1
    %v149 = vsel %vm147, %v142, 0.0
    %v150 = vsel %vm148, %v143, 0.0
    %151 = vrot.lane.b32.xlu0 %v149, 1
    %v152 = vpop.permute.xlu0 %151
    %153 = vrot.lane.b32.xlu0 %v150, 1
    %v154 = vpop.permute.xlu0 %153
    %v155 = vlaneseq
    %v156 = vand.u32 %v155, 127
    %vm157 = vcmp.lt.s32.totalorder %v156, 1
    %v158 = vsel %vm157, %v152, %v154
    %v159 = vsel %vm157, %v154, %v152
    %vm160 = vcmp.eq.s32.totalorder %v40, 0
    %v161 = vsel %vm160, 1, 0
    %v162 = vperm.slane %v161, 0
    %v163 = vperm.slane %v161, 1
    %vm164 = vcmp.eq.s32.totalorder %v162, 1
    %vm165 = vcmp.eq.s32.totalorder %v163, 1
    %v166 = vsel %vm164, 0.0, %v159
    %v167 = vsel %vm165, 0.0, %v158
    %168 = vrot.lane.b32.xlu0 %v149, 127
    %v169 = vpop.permute.xlu0 %168
    %170 = vrot.lane.b32.xlu0 %v150, 127
    %v171 = vpop.permute.xlu0 %170
    %vm172 = vcmp.lt.s32.totalorder %v156, 127
    %v173 = vsel %vm172, %v169, %v171
    %v174 = vsel %vm172, %v171, %v169
    %vm175 = vcmp.eq.s32.totalorder %v40, 127
    %v176 = vsel %vm175, 1, 0
    %v177 = vperm.slane %v176, 0
    %v178 = vperm.slane %v176, 1
    %vm179 = vcmp.eq.s32.totalorder %v177, 1
    %vm180 = vcmp.eq.s32.totalorder %v178, 1
    %v181 = vsel %vm179, 0.0, %v173
    %v182 = vsel %vm180, 0.0, %v174
    %v183 = vld [vmem:[%s4] sm:$0xff]
    %v184 = vld [vmem:[%s3] sm:$0xff]
    %vm185 = vcmask 64512
    %v187 = vsel %vm185, %v184, 0
    %189 = vmatpush.msra.mxu0 0.0
    %190 = vmatpush.msra.mxu0 0.0
    %191 = vmatpush.msra.mxu0 0.0
    %192 = vmatpush.msra.mxu0 0.0
    %193 = vmatpush.msra.mxu0 0.0
    %194 = vmatpush.msra.mxu0 0.0
    %195 = vmatpush.msra.mxu0 0.0
    %196 = vmatpush.msra.mxu0 0.0
    %197 = vmatpush.msra.mxu0 0.0
    %198 = vmatpush.msra.mxu0 0.0
    %199 = vmatpush.msra.mxu0 0.0
    %200 = vmatpush.msra.mxu0 0.0
    %201 = vmatpush.msra.mxu0 0.0
    %202 = vmatpush.msra.mxu0 0.0
    %203 = vmatpush.msra.mxu0 0.0
    %204 = vmatpush.msra.mxu0 %v166
    %205 = vmatmul.f32.gmra.mxu0 %v187
    %v206 = vpop.f32.mrf.mxu0
    %v207 = vadd.f32 0.0, %v206
    %208 = vdwg.mxu0
    %209 = vmatpush.msra.mxu0 0.0
    %210 = vmatpush.msra.mxu0 0.0
    %211 = vmatpush.msra.mxu0 0.0
    %212 = vmatpush.msra.mxu0 0.0
    %213 = vmatpush.msra.mxu0 0.0
    %214 = vmatpush.msra.mxu0 0.0
    %215 = vmatpush.msra.mxu0 0.0
    %216 = vmatpush.msra.mxu0 0.0
    %217 = vmatpush.msra.mxu0 0.0
    %218 = vmatpush.msra.mxu0 0.0
    %219 = vmatpush.msra.mxu0 0.0
    %220 = vmatpush.msra.mxu0 0.0
    %221 = vmatpush.msra.mxu0 0.0
    %222 = vmatpush.msra.mxu0 0.0
    %223 = vmatpush.msra.mxu0 0.0
    %224 = vmatpush.msra.mxu0 %v167
    %225 = vmatmul.f32.gmra.mxu0 %v187
    %v226 = vpop.f32.mrf.mxu0
    %v227 = vadd.f32 0.0, %v226
    %228 = vdwg.mxu0
    %v230 = vsel %vm185, %v183, 0
    %232 = vmatpush.msra.mxu0 0.0
    %233 = vmatpush.msra.mxu0 0.0
    %234 = vmatpush.msra.mxu0 0.0
    %235 = vmatpush.msra.mxu0 0.0
    %236 = vmatpush.msra.mxu0 0.0
    %237 = vmatpush.msra.mxu0 0.0
    %238 = vmatpush.msra.mxu0 0.0
    %239 = vmatpush.msra.mxu0 0.0
    %240 = vmatpush.msra.mxu0 0.0
    %241 = vmatpush.msra.mxu0 0.0
    %242 = vmatpush.msra.mxu0 0.0
    %243 = vmatpush.msra.mxu0 0.0
    %244 = vmatpush.msra.mxu0 0.0
    %245 = vmatpush.msra.mxu0 0.0
    %246 = vmatpush.msra.mxu0 0.0
    %247 = vmatpush.msra.mxu0 %v149
    %248 = vmatmul.f32.gmra.mxu0 %v230
    %v249 = vpop.f32.mrf.mxu0
    %v250 = vadd.f32 %v207, %v249
    %251 = vdwg.mxu0
    %252 = vmatpush.msra.mxu0 0.0
    %253 = vmatpush.msra.mxu0 0.0
    %254 = vmatpush.msra.mxu0 0.0
    %255 = vmatpush.msra.mxu0 0.0
    %256 = vmatpush.msra.mxu0 0.0
    %257 = vmatpush.msra.mxu0 0.0
    %258 = vmatpush.msra.mxu0 0.0
    %259 = vmatpush.msra.mxu0 0.0
    %260 = vmatpush.msra.mxu0 0.0
    %261 = vmatpush.msra.mxu0 0.0
    %262 = vmatpush.msra.mxu0 0.0
    %263 = vmatpush.msra.mxu0 0.0
    %264 = vmatpush.msra.mxu0 0.0
    %265 = vmatpush.msra.mxu0 0.0
    %266 = vmatpush.msra.mxu0 0.0
    %267 = vmatpush.msra.mxu0 %v150
    %268 = vmatmul.f32.gmra.mxu0 %v230
    %v269 = vpop.f32.mrf.mxu0
    %v270 = vadd.f32 %v227, %v269
    %271 = vdwg.mxu0
    %v272 = vld [vmem:[%s5] sm:$0xff]
    %v274 = vsel %vm185, %v272, 0
    %276 = vmatpush.msra.mxu0 0.0
    %277 = vmatpush.msra.mxu0 0.0
    %278 = vmatpush.msra.mxu0 0.0
    %279 = vmatpush.msra.mxu0 0.0
    %280 = vmatpush.msra.mxu0 0.0
    %281 = vmatpush.msra.mxu0 0.0
    %282 = vmatpush.msra.mxu0 0.0
    %283 = vmatpush.msra.mxu0 0.0
    %284 = vmatpush.msra.mxu0 0.0
    %285 = vmatpush.msra.mxu0 0.0
    %286 = vmatpush.msra.mxu0 0.0
    %287 = vmatpush.msra.mxu0 0.0
    %288 = vmatpush.msra.mxu0 0.0
    %289 = vmatpush.msra.mxu0 0.0
    %290 = vmatpush.msra.mxu0 0.0
    %291 = vmatpush.msra.mxu0 %v181
    %292 = vmatmul.f32.gmra.mxu0 %v274
    %v293 = vpop.f32.mrf.mxu0
    %v294 = vadd.f32 0.0, %v293
    %295 = vdwg.mxu0
    %296 = vmatpush.msra.mxu0 0.0
    %297 = vmatpush.msra.mxu0 0.0
    %298 = vmatpush.msra.mxu0 0.0
    %299 = vmatpush.msra.mxu0 0.0
    %300 = vmatpush.msra.mxu0 0.0
    %301 = vmatpush.msra.mxu0 0.0
    %302 = vmatpush.msra.mxu0 0.0
    %303 = vmatpush.msra.mxu0 0.0
    %304 = vmatpush.msra.mxu0 0.0
    %305 = vmatpush.msra.mxu0 0.0
    %306 = vmatpush.msra.mxu0 0.0
    %307 = vmatpush.msra.mxu0 0.0
    %308 = vmatpush.msra.mxu0 0.0
    %309 = vmatpush.msra.mxu0 0.0
    %310 = vmatpush.msra.mxu0 0.0
    %311 = vmatpush.msra.mxu0 %v182
    %312 = vmatmul.f32.gmra.mxu0 %v274
    %v313 = vpop.f32.mrf.mxu0
    %v314 = vadd.f32 0.0, %v313
    %315 = vdwg.mxu0
    %v316 = vadd.f32 %v250, %v294
    %v317 = vadd.f32 %v270, %v314
    %v318 = vsel %vm147, %v316, 0.0
    %v319 = vsel %vm148, %v317, 0.0
    %v320 = vld [vmem:[%s9] sm:$0xff]
    %v321 = vadd.f32 %v318, %v319
    %322 = vadd.xlane.f32.xlu0 %v321
    %v323 = vpop.xlane.xlu0 %322
    %v324 = vmul.f32 %v318, %v318
    %v325 = vmul.f32 %v319, %v319
    %v326 = vadd.f32 %v324, %v325
    %327 = vadd.xlane.f32.xlu0 %v326
    %v328 = vpop.xlane.xlu0 %327
    %v329 = vmul.f32 %v323, 0.0625
    %v330 = vmul.f32 %v328, 0.0625
    %v331 = vmul.f32 %v329, %v329
    %v332 = vsub.f32 %v330, %v331
    %v333 = vmax.f32 %v332, 0.0
    %v334 = vadd.f32 %v333, 1e-05
    %v335 = vrsqrt.pop %v334
    %v336 = vmul.f32 %v335, %v334
    %v337 = vmul.f32 %v336, %v335
    %v338 = vmul.f32 0.5, %v337
    %v339 = vsub.f32 1.5, %v338
    %v340 = vmul.f32 %v335, %v339
    %vm341 = vweird.f32 %v334
    %vm342 = vweird.f32 %v335
    %vm343 = vmor %vm341, %vm342
    %v344 = vsel %vm343, %v335, %v340
    %v345 = vmul.f32 %v320, %v344
    %v346 = vmul.f32 %v329, %v345
    %348 = vrot.lane.b32.xlu0 %v346, 1
    %v349 = vpop.permute.xlu0 %348
    %v351 = vsub.f32 %v320, %v349
    %353 = vset.pattern.permute.xlu0 0
    %354 = vperm.xlu0 %353, %v345
    %v355 = vpop.permute.xlu0 %354
    %v357 = vmul.f32 %v318, %v355
    %v358 = vmul.f32 %v319, %v355
    %360 = vset.pattern.permute.xlu0 1
    %361 = vperm.xlu0 %360, %v351
    %v362 = vpop.permute.xlu0 %361
    %v364 = vadd.f32 %v357, %v362
    %v365 = vadd.f32 %v358, %v362
    %v366 = vmax.f32 %v364, 0.0
    %v367 = vmax.f32 %v365, 0.0
    %v368 = vsel %vm147, %v366, 0.0
    %v369 = vsel %vm148, %v367, 0.0
    %v370 = vld [vmem:[%s6] sm:$0xff]
    %v371 = vld [vmem:[%s6 + $0x8] sm:$0xff]
    %v373 = vsel %vm185, %v370, 0
    %v376 = vsel %vm185, %v371, 0
    %378 = vmatpush.msra.mxu0 0.0
    %379 = vmatpush.msra.mxu0 0.0
    %380 = vmatpush.msra.mxu0 0.0
    %381 = vmatpush.msra.mxu0 0.0
    %382 = vmatpush.msra.mxu0 0.0
    %383 = vmatpush.msra.mxu0 0.0
    %384 = vmatpush.msra.mxu0 0.0
    %385 = vmatpush.msra.mxu0 0.0
    %386 = vmatpush.msra.mxu0 0.0
    %387 = vmatpush.msra.mxu0 0.0
    %388 = vmatpush.msra.mxu0 0.0
    %389 = vmatpush.msra.mxu0 0.0
    %390 = vmatpush.msra.mxu0 0.0
    %391 = vmatpush.msra.mxu0 0.0
    %392 = vmatpush.msra.mxu0 0.0
    %393 = vmatpush.msra.mxu0 %v368
    %394 = vmatmul.f32.gmra.mxu0 %v373
    %v395 = vpop.f32.mrf.mxu0
    %v396 = vadd.f32 0.0, %v395
    %397 = vmatmul.f32.gmra.mxu0 %v376
    %v398 = vpop.f32.mrf.mxu0
    %v399 = vadd.f32 0.0, %v398
    %400 = vdwg.mxu0
    %401 = vmatpush.msra.mxu0 0.0
    %402 = vmatpush.msra.mxu0 0.0
    %403 = vmatpush.msra.mxu0 0.0
    %404 = vmatpush.msra.mxu0 0.0
    %405 = vmatpush.msra.mxu0 0.0
    %406 = vmatpush.msra.mxu0 0.0
    %407 = vmatpush.msra.mxu0 0.0
    %408 = vmatpush.msra.mxu0 0.0
    %409 = vmatpush.msra.mxu0 0.0
    %410 = vmatpush.msra.mxu0 0.0
    %411 = vmatpush.msra.mxu0 0.0
    %412 = vmatpush.msra.mxu0 0.0
    %413 = vmatpush.msra.mxu0 0.0
    %414 = vmatpush.msra.mxu0 0.0
    %415 = vmatpush.msra.mxu0 0.0
    %416 = vmatpush.msra.mxu0 %v369
    %417 = vmatmul.f32.gmra.mxu0 %v373
    %v418 = vpop.f32.mrf.mxu0
    %v419 = vadd.f32 0.0, %v418
    %420 = vmatmul.f32.gmra.mxu0 %v376
    %v421 = vpop.f32.mrf.mxu0
    %v422 = vadd.f32 0.0, %v421
    %423 = vdwg.mxu0
    %v424 = vld [vmem:[%s10] sm:$0xff]
    %v425 = vld [vmem:[%s10 + $0x8] sm:$0xff]
    %v426 = vadd.f32 %v396, %v419
    %427 = vadd.xlane.f32.xlu0 %v426
    %v428 = vpop.xlane.xlu0 %427
    %v429 = vadd.f32 %v399, %v422
    %430 = vadd.xlane.f32.xlu0 %v429
    %v431 = vpop.xlane.xlu0 %430
    %v432 = vmul.f32 %v396, %v396
    %v433 = vmul.f32 %v419, %v419
    %v434 = vmul.f32 %v399, %v399
    %v435 = vmul.f32 %v422, %v422
    %v436 = vadd.f32 %v432, %v433
    %437 = vadd.xlane.f32.xlu0 %v436
    %v438 = vpop.xlane.xlu0 %437
    %v439 = vadd.f32 %v434, %v435
    %440 = vadd.xlane.f32.xlu0 %v439
    %v441 = vpop.xlane.xlu0 %440
    %v442 = vmul.f32 %v428, 0.0625
    %v443 = vmul.f32 %v431, 0.0625
    %v444 = vmul.f32 %v438, 0.0625
    %v445 = vmul.f32 %v441, 0.0625
    %v446 = vmul.f32 %v442, %v442
    %v447 = vmul.f32 %v443, %v443
    %v448 = vsub.f32 %v444, %v446
    %v449 = vsub.f32 %v445, %v447
    %v450 = vmax.f32 %v448, 0.0
    %v451 = vmax.f32 %v449, 0.0
    %v452 = vadd.f32 %v450, 1e-05
    %v453 = vadd.f32 %v451, 1e-05
    %v454 = vrsqrt.pop %v452
    %v455 = vmul.f32 %v454, %v452
    %v456 = vmul.f32 %v455, %v454
    %v457 = vmul.f32 0.5, %v456
    %v458 = vsub.f32 1.5, %v457
    %v459 = vmul.f32 %v454, %v458
    %vm460 = vweird.f32 %v452
    %vm461 = vweird.f32 %v454
    %vm462 = vmor %vm460, %vm461
    %v463 = vsel %vm462, %v454, %v459
    %v464 = vrsqrt.pop %v453
    %v465 = vmul.f32 %v464, %v453
    %v466 = vmul.f32 %v465, %v464
    %v467 = vmul.f32 0.5, %v466
    %v468 = vsub.f32 1.5, %v467
    %v469 = vmul.f32 %v464, %v468
    %vm470 = vweird.f32 %v453
    %vm471 = vweird.f32 %v464
    %vm472 = vmor %vm470, %vm471
    %v473 = vsel %vm472, %v464, %v469
    %v474 = vmul.f32 %v424, %v463
    %v475 = vmul.f32 %v425, %v473
    %v476 = vmul.f32 %v442, %v474
    %v477 = vmul.f32 %v443, %v475
    %480 = vrot.lane.b32.xlu0 %v476, 1
    %v481 = vpop.permute.xlu0 %480
    %482 = vrot.lane.b32.xlu0 %v477, 1
    %v483 = vpop.permute.xlu0 %482
    %v486 = vsub.f32 %v424, %v481
    %v487 = vsub.f32 %v425, %v483
    %489 = vset.pattern.permute.xlu0 0
    %490 = vperm.xlu0 %489, %v474
    %v491 = vpop.permute.xlu0 %490
    %494 = vset.pattern.permute.xlu0 0
    %495 = vperm.xlu0 %494, %v475
    %v496 = vpop.permute.xlu0 %495
    %v498 = vmul.f32 %v396, %v491
    %v499 = vmul.f32 %v419, %v491
    %v500 = vmul.f32 %v399, %v496
    %v501 = vmul.f32 %v422, %v496
    %503 = vset.pattern.permute.xlu0 1
    %504 = vperm.xlu0 %503, %v486
    %v505 = vpop.permute.xlu0 %504
    %508 = vset.pattern.permute.xlu0 1
    %509 = vperm.xlu0 %508, %v487
    %v510 = vpop.permute.xlu0 %509
    %v512 = vadd.f32 %v498, %v505
    %v513 = vadd.f32 %v499, %v505
    %v514 = vadd.f32 %v500, %v510
    %v515 = vadd.f32 %v501, %v510
    %v516 = vmax.f32 %v512, 0.0
    %v517 = vmax.f32 %v513, 0.0
    %v518 = vmax.f32 %v514, 0.0
    %v519 = vmax.f32 %v515, 0.0
    %v520 = vsel %vm147, %v516, 0.0
    %v521 = vsel %vm148, %v517, 0.0
    %v522 = vsel %vm147, %v518, 0.0
    %v523 = vsel %vm148, %v519, 0.0
    %v524 = vld [vmem:[%s7] sm:$0xff]
    %v525 = vld [vmem:[%s7 + $0x8] sm:$0xff]
    %527 = vset.pattern.permute.xlu0 2
    %528 = vperm.xlu0 %527, %v424
    %v529 = vpop.permute.xlu0 %528
    %532 = vset.pattern.permute.xlu0 2
    %533 = vperm.xlu0 %532, %v425
    %v534 = vpop.permute.xlu0 %533
    %536 = vst [vmem:[#allocation1] ss:$2 sm:$0xff] %v39
    %v537 = vld.sshfl [vmem:[#allocation1] sm:$0xff pattern:$0x75316420]
    %v538 = vld.sshfl [vmem:[#allocation1 + $0x8] sm:$0xff pattern:$0x75316420]
    %v540 = vsel %vm47, %v524, 0
    %v543 = vsel %vm47, %v525, 0
    %v545 = vsel %vm51, %v537, 0
    %v547 = vsel %vm51, %v538, 0
    %549 = vmatpush.msra.mxu0 0.0
    %550 = vmatpush.msra.mxu0 0.0
    %551 = vmatpush.msra.mxu0 0.0
    %552 = vmatpush.msra.mxu0 0.0
    %553 = vmatpush.msra.mxu0 0.0
    %554 = vmatpush.msra.mxu0 0.0
    %555 = vmatpush.msra.mxu0 0.0
    %556 = vmatpush.msra.mxu0 0.0
    %557 = vmatpush.msra.mxu0 0.0
    %558 = vmatpush.msra.mxu0 0.0
    %559 = vmatpush.msra.mxu0 0.0
    %560 = vmatpush.msra.mxu0 0.0
    %561 = vmatpush.msra.mxu0 0.0
    %562 = vmatpush.msra.mxu0 0.0
    %563 = vmatpush.msra.mxu0 0.0
    %564 = vmatpush.msra.mxu0 %v545
    %565 = vmatmul.f32.gmra.mxu0 %v540
    %v566 = vpop.f32.mrf.mxu0
    %v567 = vadd.f32 %v529, %v566
    %568 = vmatmul.f32.gmra.mxu0 %v543
    %v569 = vpop.f32.mrf.mxu0
    %v570 = vadd.f32 %v534, %v569
    %571 = vdwg.mxu0
    %572 = vmatpush.msra.mxu0 0.0
    %573 = vmatpush.msra.mxu0 0.0
    %574 = vmatpush.msra.mxu0 0.0
    %575 = vmatpush.msra.mxu0 0.0
    %576 = vmatpush.msra.mxu0 0.0
    %577 = vmatpush.msra.mxu0 0.0
    %578 = vmatpush.msra.mxu0 0.0
    %579 = vmatpush.msra.mxu0 0.0
    %580 = vmatpush.msra.mxu0 0.0
    %581 = vmatpush.msra.mxu0 0.0
    %582 = vmatpush.msra.mxu0 0.0
    %583 = vmatpush.msra.mxu0 0.0
    %584 = vmatpush.msra.mxu0 0.0
    %585 = vmatpush.msra.mxu0 0.0
    %586 = vmatpush.msra.mxu0 0.0
    %587 = vmatpush.msra.mxu0 %v547
    %588 = vmatmul.f32.gmra.mxu0 %v540
    %v589 = vpop.f32.mrf.mxu0
    %v590 = vadd.f32 %v529, %v589
    %591 = vmatmul.f32.gmra.mxu0 %v543
    %v592 = vpop.f32.mrf.mxu0
    %v593 = vadd.f32 %v534, %v592
    %594 = vdwg.mxu0
    %v595 = vadd.f32 %v520, %v567
    %v596 = vadd.f32 %v521, %v590
    %v597 = vadd.f32 %v522, %v570
    %v598 = vadd.f32 %v523, %v593
    %599 = vst [vmem:[#allocation2] sm:$0xff] %v595
    %600 = vst [vmem:[#allocation2 + $0x8] sm:$0xff] %v596
    %601 = vst [vmem:[#allocation2 + $0x10] sm:$0xff] %v597
    %602 = vst [vmem:[#allocation2 + $0x18] sm:$0xff] %v598
    // Predicated region
    $region46: #{tpu_custom_call.1} parent=1 // pred_check
      _
    $region47: #{tpu_custom_call.1} parent=1 // pred_check_branch
      %604 = sbr.rel (0) target = $region49
    $region48: #{tpu_custom_call.1} parent=1 // pred_region
      %606 = vsyncadd [#allocation3], 0
      %s607 = sshll.u32 [#allocation2], 4
      %s608 = int_to_ptr.vmem [resolvable:$true] %s607
      %s609 = sshll.u32 %s11, 4
      %s610 = int_to_ptr.hbm [resolvable:$true] %s609
      %615 = dma.vmem_to_hbm [thread:$0]  %s608, 512, %s610, [#allocation3], 256, 256, 16
    $region49: #{tpu_custom_call.1} parent=1 // pred_fallthru
      _
    // Predicated region
    $region50: #{tpu_custom_call.1} parent=1 // pred_check
      _
    $region51: #{tpu_custom_call.1} parent=1 // pred_check_branch
      %617 = sbr.rel (0) target = $region53
    $region52: #{tpu_custom_call.1} parent=1 // pred_region
      %619 = dma.done [#allocation3], 512
    $region53: #{tpu_custom_call.1} parent=1 // pred_fallthru
      _
    %620 = vsyncpa [#allocation3], 1

</llo_original>
